<compile_context>
chip_gen: v7x
topology: tpu7x:2x2x1
jax: 0.10.0
libtpu: 0.0.40
codegen_flags: <defaults>
</compile_context>

<pallas_src>
import functools

import jax
import jax.numpy as jnp
from jax.experimental import pallas as pl
from jax.experimental.pallas import tpu as pltpu


# ---------------------------------------------------------------------------
# Static parity structure for the fused nearest-2x-upsample + conv3x3(pad=1).
#
# For u[p, q] = x[p//2, q//2], the 3x3-conv output at (2i+a, 2j+b) only touches
# low-res rows {i-1+a, i+a} and cols {j-1+b, j+b}; 3x3 taps hitting the same
# low-res pixel are summed offline.  Blocks are grouped by the input shift
# (t, u) = (a+dr, b+ds) so each shifted LHS is used by exactly one wide matmul.
# ---------------------------------------------------------------------------
_PARITY_TAPS = {0: ((0,), (1, 2)), 1: ((0, 1), (2,))}
_ROW_GROUPS = {0: ((0, 0),), 1: ((0, 1), (1, 0)), 2: ((1, 1),)}


def _parity_segments():
    segs = []
    for t in range(3):
        for u in range(3):
            seg = []
            for (a, dr) in _ROW_GROUPS[t]:
                for (b, ds) in _ROW_GROUPS[u]:
                    seg.append((a, b, dr, ds))
            segs.append(tuple(seg))
    return tuple(segs)


_SEGMENTS = _parity_segments()          # 9 segments, 16 weight blocks total


def _fold_upsample2x_into_3x3_packed(w3x3):
    """(3,3,Cin,Cout) HWIO conv weight -> (Cin, 16*Cout) packed parity weights."""
    blocks = []
    for seg in _SEGMENTS:
        for (a, b, dr, ds) in seg:
            blocks.append(sum(w3x3[dy, dx]
                              for dy in _PARITY_TAPS[a][dr]
                              for dx in _PARITY_TAPS[b][ds]))
    return jnp.concatenate(blocks, axis=-1)


# ---------------------------------------------------------------------------
# 1x1 conv + (folded BN) bias + ReLU == (M, Cin) @ (Cin, Cout) on the MXU
# ---------------------------------------------------------------------------
def _conv1x1_relu_kernel(x_ref, w_ref, b_ref, o_ref):
    y = jnp.dot(x_ref[...], w_ref[...], preferred_element_type=jnp.float32)
    o_ref[...] = jnp.maximum(y + b_ref[...], 0.0).astype(o_ref.dtype)


def conv1x1_relu(x_nhwc, w, b, *, tm_target=512):
    """1x1 conv (stride 1) + bias + ReLU.  w: (Cin, Cout), b: (Cout,).  bf16 out."""
    n, hs, ws, cin = x_nhwc.shape
    cout = w.shape[1]
    m = n * hs * ws
    tm = m if m <= tm_target else tm_target
    out = pl.pallas_call(
        _conv1x1_relu_kernel,
        out_shape=jax.ShapeDtypeStruct((m, cout), jnp.bfloat16),
        grid_spec=pltpu.PrefetchScalarGridSpec(
            num_scalar_prefetch=0,
            grid=(pl.cdiv(m, tm),),
            in_specs=[
                pl.BlockSpec((tm, cin), lambda i: (i, 0)),
                pl.BlockSpec((cin, cout), lambda i: (0, 0)),
                pl.BlockSpec((1, cout), lambda i: (0, 0)),
            ],
            out_specs=pl.BlockSpec((tm, cout), lambda i: (i, 0)),
        ),
        compiler_params=pltpu.CompilerParams(
            dimension_semantics=("parallel",)),
    )(x_nhwc.reshape(m, cin).astype(jnp.bfloat16),
      w.astype(jnp.bfloat16),
      b.reshape(1, cout).astype(jnp.float32))
    return out.reshape(n, hs, ws, cout)


# ---------------------------------------------------------------------------
# Shared per-tile parity-plane computation (bf16 matmuls, f32 accumulation).
# ---------------------------------------------------------------------------
def _parity_planes(x, top, bot, w_ref, *, th, ws, cin, cout, segments):
    """x: (th, ws, cin); top/bot: (1, ws, cin) halo rows (already zero-masked at
    the image boundary).  Returns dict[(a, b)] -> (th*ws, cout) f32 planes."""
    xh = jnp.concatenate([top, x, bot], axis=0)                # (th+2, ws, cin)
    zcol = jnp.zeros((th + 2, 1, cin), xh.dtype)
    xm1 = jnp.concatenate([zcol, xh[:, :ws - 1, :]], axis=1)   # col j -> x[:, j-1]
    xp1 = jnp.concatenate([xh[:, 1:, :], zcol], axis=1)        # col j -> x[:, j+1]
    cols = (xm1, xh, xp1)
    # lhs[t][u][i*ws + j] == x[i + t - 1, j + u - 1]  (zero outside the image;
    # the flatten reshape is layout-free since ws is a multiple of 8).
    lhs = [[cols[u][t:t + th].reshape(th * ws, cin) for u in range(3)]
           for t in range(3)]
    planes = {}
    off = 0
    for idx, seg in enumerate(segments):
        t, u = divmod(idx, 3)
        width = len(seg) * cout
        res = jnp.dot(lhs[t][u], w_ref[:, off:off + width],
                      preferred_element_type=jnp.float32)
        for k, (a, b, _, _) in enumerate(seg):
            blk = res[:, k * cout:(k + 1) * cout]
            planes[(a, b)] = blk if (a, b) not in planes else planes[(a, b)] + blk
        off += width
    return planes


def _pick_th(hs, ws, cin, cout, budget_bytes=8 * 1024 * 1024):
    """Largest divisor of hs whose per-tile live VMEM estimate fits the budget."""
    per_row = ws * (cin * 2 * 16 + cout * 4 * 8 + cout * 2 * 8)
    for th in sorted((d for d in range(1, hs + 1) if hs % d == 0), reverse=True):
        if (th + 2) * per_row <= budget_bytes:
            return th
    return 1


# ---------------------------------------------------------------------------
# Fused: nearest-2x upsample -> conv3x3(pad=1) + (folded BN) bias -> ReLU
# ---------------------------------------------------------------------------
def _up_conv3x3_relu_kernel(x_ref, top_ref, bot_ref, w_ref, b2_ref, o_ref, *,
                            th, ws, cin, cout, segments):
    i = pl.program_id(1)
    last = pl.num_programs(1) - 1
    zero = jnp.zeros_like(top_ref[0])
    top = jnp.where(i == 0, zero, top_ref[0])          # conv zero-pad at image top
    bot = jnp.where(i == last, zero, bot_ref[0])       # conv zero-pad at image bottom
    planes = _parity_planes(x_ref[0], top, bot, w_ref, th=th, ws=ws,
                            cin=cin, cout=cout, segments=segments)
    for a in (0, 1):
        y = jnp.maximum(
            jnp.concatenate([planes[(a, 0)], planes[(a, 1)]], axis=-1)
            + b2_ref[...], 0.0)
        o_ref[0, :, a, :, :] = y.astype(o_ref.dtype).reshape(th, ws, 2 * cout)


def up2x_conv3x3_relu(x_nhwc, w3x3, b):
    """nearest-2x upsample -> conv3x3(pad=1) -> bias -> ReLU (one fused kernel)."""
    n, hs, ws, cin = x_nhwc.shape
    cout = w3x3.shape[-1]
    wf = _fold_upsample2x_into_3x3_packed(w3x3).astype(jnp.bfloat16)   # (cin, 16*cout)
    b2 = jnp.concatenate([b, b]).reshape(1, 2 * cout).astype(jnp.float32)
    x_bf = x_nhwc.astype(jnp.bfloat16)
    th = _pick_th(hs, ws, cin, cout)

    def top_map(nn, i):
        return (nn, jnp.maximum(i * th - 1, 0), 0, 0)

    def bot_map(nn, i):
        return (nn, jnp.minimum(i * th + th, hs - 1), 0, 0)

    kern = functools.partial(_up_conv3x3_relu_kernel, th=th, ws=ws,
                             cin=cin, cout=cout, segments=_SEGMENTS)
    out = pl.pallas_call(
        kern,
        out_shape=jax.ShapeDtypeStruct((n, hs, 2, ws, 2 * cout), jnp.bfloat16),
        grid_spec=pltpu.PrefetchScalarGridSpec(
            num_scalar_prefetch=0,
            grid=(n, hs // th),
            in_specs=[
                pl.BlockSpec((1, th, ws, cin), lambda nn, i: (nn, i, 0, 0)),
                pl.BlockSpec((1, 1, ws, cin), top_map),
                pl.BlockSpec((1, 1, ws, cin), bot_map),
                pl.BlockSpec((cin, 16 * cout), lambda nn, i: (0, 0)),
                pl.BlockSpec((1, 2 * cout), lambda nn, i: (0, 0)),
            ],
            out_specs=pl.BlockSpec((1, th, 2, ws, 2 * cout),
                                   lambda nn, i: (nn, i, 0, 0, 0)),
        ),
        compiler_params=pltpu.CompilerParams(
            dimension_semantics=("parallel", "parallel"),
            vmem_limit_bytes=48 * 1024 * 1024),
    )(x_bf, x_bf, x_bf, wf, b2)
    # (n, hs, 2, ws, 2*cout) and (n, 2hs, 2ws, cout) share the same memory order.
    return out.reshape(n, 2 * hs, 2 * ws, cout)


# ---------------------------------------------------------------------------
# Fused head: up2x -> conv3x3(64->64)+BN+ReLU -> conv1x1(64->1)+ReLU
# (1x1 head runs on the MXU via a block-diagonal (2*cout, 128) weight.)
# ---------------------------------------------------------------------------
def _up_conv3x3_head_kernel(x_ref, top_ref, bot_ref, w_ref, b2_ref,
                            w5_ref, b5_ref, o_ref, *, th, ws, cin, cout, segments):
    i = pl.program_id(1)
    last = pl.num_programs(1) - 1
    zero = jnp.zeros_like(top_ref[0])
    top = jnp.where(i == 0, zero, top_ref[0])
    bot = jnp.where(i == last, zero, bot_ref[0])
    planes = _parity_planes(x_ref[0], top, bot, w_ref, th=th, ws=ws,
                            cin=cin, cout=cout, segments=segments)
    for a in (0, 1):
        y = jnp.maximum(
            jnp.concatenate([planes[(a, 0)], planes[(a, 1)]], axis=-1)
            + b2_ref[...], 0.0).astype(jnp.bfloat16)                # (M, 2*cout)
        z = jnp.dot(y, w5_ref[...], preferred_element_type=jnp.float32)  # (M, 128)
        z = jnp.maximum(z[:, :2] + b5_ref[...], 0.0)                # cols 0/1 = parity b
        o_ref[0, :, a, :, :] = z.reshape(th, ws, 2)


def up2x_conv3x3_head(x_nhwc, w3x3, b, w5_vec, b5):
    n, hs, ws, cin = x_nhwc.shape
    cout = w3x3.shape[-1]
    wf = _fold_upsample2x_into_3x3_packed(w3x3).astype(jnp.bfloat16)
    b2 = jnp.concatenate([b, b]).reshape(1, 2 * cout).astype(jnp.float32)
    # Block-diagonal 1x1 head weight: col 0 reduces parity b=0, col 1 reduces b=1.
    w5d = jnp.zeros((2 * cout, 128), jnp.float32)
    w5d = w5d.at[:cout, 0].set(w5_vec)
    w5d = w5d.at[cout:, 1].set(w5_vec)
    w5d = w5d.astype(jnp.bfloat16)
    b5_arr = jnp.asarray(b5, jnp.float32).reshape(1, 1)
    x_bf = x_nhwc.astype(jnp.bfloat16)
    th = _pick_th(hs, ws, cin, cout)

    def top_map(nn, i):
        return (nn, jnp.maximum(i * th - 1, 0), 0, 0)

    def bot_map(nn, i):
        return (nn, jnp.minimum(i * th + th, hs - 1), 0, 0)

    kern = functools.partial(_up_conv3x3_head_kernel, th=th, ws=ws,
                             cin=cin, cout=cout, segments=_SEGMENTS)
    out = pl.pallas_call(
        kern,
        out_shape=jax.ShapeDtypeStruct((n, hs, 2, ws, 2), jnp.float32),
        grid_spec=pltpu.PrefetchScalarGridSpec(
            num_scalar_prefetch=0,
            grid=(n, hs // th),
            in_specs=[
                pl.BlockSpec((1, th, ws, cin), lambda nn, i: (nn, i, 0, 0)),
                pl.BlockSpec((1, 1, ws, cin), top_map),
                pl.BlockSpec((1, 1, ws, cin), bot_map),
                pl.BlockSpec((cin, 16 * cout), lambda nn, i: (0, 0)),
                pl.BlockSpec((1, 2 * cout), lambda nn, i: (0, 0)),
                pl.BlockSpec((2 * cout, 128), lambda nn, i: (0, 0)),
                pl.BlockSpec((1, 1), lambda nn, i: (0, 0)),
            ],
            out_specs=pl.BlockSpec((1, th, 2, ws, 2),
                                   lambda nn, i: (nn, i, 0, 0, 0)),
        ),
        compiler_params=pltpu.CompilerParams(
            dimension_semantics=("parallel", "parallel"),
            vmem_limit_bytes=48 * 1024 * 1024),
    )(x_bf, x_bf, x_bf, wf, b2, w5d, b5_arr)
    # (n, hs, 2, ws, 2) and (n, 2hs, 2ws) share the same memory order.
    return out.reshape(n, 2 * hs, 2 * ws)[:, None, :, :]            # NCHW, 1 channel


# ---------------------------------------------------------------------------
# Glue (plain JAX): BN folding, synthetic params, forward pass, f32 reference
# ---------------------------------------------------------------------------
def _fold_bn(w_hwio, b, gamma, beta, mean, var, eps=1e-5):
    scale = gamma / jnp.sqrt(var + eps)          # per-output-channel
    return w_hwio * scale, (b - mean) * scale + beta


def _init_basic_conv(key, cin, cout, k, use_bn):
    """Deterministic synthetic parameters for one BasicConv (weights in HWIO)."""
    kw_, kb_, kg, kbe, km, kv = jax.random.split(key, 6)
    fan_in = cin * k * k
    bound = 1.0 / (fan_in ** 0.5)
    w = jax.random.uniform(kw_, (k, k, cin, cout), jnp.float32, -bound, bound)
    b = jax.random.uniform(kb_, (cout,), jnp.float32, -bound, bound)
    if use_bn:
        gamma = jax.random.uniform(kg, (cout,), jnp.float32, 0.5, 1.5)
        beta = jax.random.uniform(kbe, (cout,), jnp.float32, -0.1, 0.1)
        mean = jax.random.uniform(km, (cout,), jnp.float32, -0.1, 0.1)
        var = jax.random.uniform(kv, (cout,), jnp.float32, 0.5, 1.5)
        w, b = _fold_bn(w, b, gamma, beta, mean, var)
    return w, b


def decoder_forward(x_nchw, params):
    """Pallas decoder forward.  Input NCHW (PyTorch convention), output NCHW."""
    (w1, b1), (w2, b2), (w3, b3), (w4, b4), (w5, b5) = params
    x = jnp.transpose(x_nchw, (0, 2, 3, 1))               # NCHW -> NHWC
    x = conv1x1_relu(x, w1[0, 0], b1)                     # BasicConv(Cf, 256, k=1, bn)
    x = up2x_conv3x3_relu(x, w2, b2)                      # up2x + BasicConv(256,128,k3)
    x = up2x_conv3x3_relu(x, w3, b3)                      # up2x + BasicConv(128, 64,k3)
    x = up2x_conv3x3_head(x, w4, b4, w5[0, 0, :, 0], b5)  # up2x + conv3x3 + conv1x1->1
    return x                                              # (N, 1, 8H, 8W)


def upsample2x(x_nhwc):
    return jnp.repeat(jnp.repeat(x_nhwc, 2, axis=1), 2, axis=2)


def _ref_forward(x_nchw, params):
    """Pure-JAX (XLA conv, f32) reference with identical folded parameters."""
    def conv(x, w, b, pad):
        y = jax.lax.conv_general_dilated(
            x, w, (1, 1), [(pad, pad), (pad, pad)],
            dimension_numbers=('NHWC', 'HWIO', 'NHWC'))
        return jnp.maximum(y + b, 0.0)

    (w1, b1), (w2, b2), (w3, b3), (w4, b4), (w5, b5) = params
    x = jnp.transpose(x_nchw, (0, 2, 3, 1))
    x = conv(x, w1, b1, 0); x = upsample2x(x)
    x = conv(x, w2, b2, 1); x = upsample2x(x)
    x = conv(x, w3, b3, 1); x = upsample2x(x)
    x = conv(x, w4, b4, 1)
    x = conv(x, w5, b5, 0)
    return jnp.transpose(x, (0, 3, 1, 2))


if __name__ == "__main__":
    key = jax.random.PRNGKey(0)
    kx, k1, k2, k3, k4, k5 = jax.random.split(key, 6)

    # Small shapes: feature_channel=64 (stand-in for the default 512), 8x8 features.
    N, C, H, W = 2, 64, 8, 8
    x = jax.random.normal(kx, (N, C, H, W), jnp.float32)

    params = [
        _init_basic_conv(k1, C, 256, 1, True),
        _init_basic_conv(k2, 256, 128, 3, True),
        _init_basic_conv(k3, 128, 64, 3, True),
        _init_basic_conv(k4, 64, 64, 3, True),
        _init_basic_conv(k5, 64, 1, 1, False),
    ]

    y = jax.block_until_ready(decoder_forward(x, params))
    assert y.shape == (N, 1, H * 8, W * 8), y.shape

    y_ref = jax.block_until_ready(_ref_forward(x, params))
    # bf16 matmuls / bf16 inter-stage activations (f32 accumulation): tolerance
    # is scaled to the output magnitude rather than the original 1e-3 allclose.
    max_err = float(jnp.max(jnp.abs(y.astype(jnp.float32) - y_ref)))
    scale = float(jnp.max(jnp.abs(y_ref)))
    if max_err > 3e-2 * scale + 3e-2:
        raise AssertionError(
            f"Pallas decoder does not match XLA reference: "
            f"max_err={max_err:.4g}, ref_scale={scale:.4g}")

    print("KERNEL_OK")
</pallas_src>

<mosaic_0001>
module attributes {stable_mosaic.version = 11 : i64} {
  func.func @_conv1x1_relu_kernel(%arg0: i32, %arg1: memref<128x64xbf16, #tpu.memory_space<vmem>>, %arg2: memref<64x256xbf16, #tpu.memory_space<vmem>>, %arg3: memref<1x256xf32, #tpu.memory_space<vmem>>, %arg4: memref<128x256xbf16, #tpu.memory_space<vmem>>) attributes {dimension_semantics = [#tpu.dimension_semantics<parallel>], iteration_bounds = array<i64: 1>, scalar_prefetch = 0 : i64, scratch_operands = 0 : i64, tpu.core_type = #tpu.core_type<tc>, window_params = [{transform_indices = @transform_0, window_bounds = array<i64: 128, 64>}, {pipeline_mode = #tpu.pipeline_mode<synchronous>, transform_indices = @transform_1, window_bounds = array<i64: 64, 256>}, {pipeline_mode = #tpu.pipeline_mode<synchronous>, transform_indices = @transform_2, window_bounds = array<i64: 1, 256>}, {transform_indices = @transform_3, window_bounds = array<i64: 128, 256>}]} {
    %c0 = arith.constant 0 : index
    %c0_0 = arith.constant 0 : index
    %0 = vector.load %arg1[%c0, %c0_0] : memref<128x64xbf16, #tpu.memory_space<vmem>>, vector<128x64xbf16>
    %c0_1 = arith.constant 0 : index
    %c0_2 = arith.constant 0 : index
    %1 = vector.load %arg2[%c0_1, %c0_2] : memref<64x256xbf16, #tpu.memory_space<vmem>>, vector<64x256xbf16>
    %cst = arith.constant dense<0.000000e+00> : vector<128x256xf32>
    %2 = tpu.matmul %0, %1, %cst {dimension_numbers = #tpu.dot_dimension_numbers<[1], [0], [0], [1], [0, 0, 1, 1], [], []>} : vector<128x64xbf16>, vector<64x256xbf16>, vector<128x256xf32> -> vector<128x256xf32>
    %c0_3 = arith.constant 0 : index
    %c0_4 = arith.constant 0 : index
    %3 = vector.load %arg3[%c0_3, %c0_4] : memref<1x256xf32, #tpu.memory_space<vmem>>, vector<1x256xf32>
    %4 = vector.broadcast %3 : vector<1x256xf32> to vector<128x256xf32>
    %5 = arith.addf %2, %4 : vector<128x256xf32>
    %cst_5 = arith.constant 0.000000e+00 : f32
    %6 = vector.broadcast %cst_5 : f32 to vector<128x256xf32>
    %7 = arith.maximumf %5, %6 : vector<128x256xf32>
    %8 = arith.truncf %7 : vector<128x256xf32> to vector<128x256xbf16>
    %c0_6 = arith.constant 0 : index
    %c0_7 = arith.constant 0 : index
    %9 = vector.load %arg4[%c0_6, %c0_7] : memref<128x256xbf16, #tpu.memory_space<vmem>>, vector<128x256xbf16>
    tpu.vector_store %arg4[%c0_6, %c0_7], %8 {strides = array<i32>} : memref<128x256xbf16, #tpu.memory_space<vmem>>, vector<128x256xbf16>,
    return
  }
  func.func @transform_0(%arg0: i32) -> (i32, i32) {
    %c0_i32 = arith.constant 0 : i32
    %c0_i32_0 = arith.constant 0 : i32
    return %arg0, %c0_i32 : i32, i32
  }
  func.func @transform_1(%arg0: i32) -> (i32, i32) {
    %c0_i32 = arith.constant 0 : i32
    %c0_i32_0 = arith.constant 0 : i32
    %c0_i32_1 = arith.constant 0 : i32
    return %c0_i32, %c0_i32_0 : i32, i32
  }
  func.func @transform_2(%arg0: i32) -> (i32, i32) {
    %c0_i32 = arith.constant 0 : i32
    %c0_i32_0 = arith.constant 0 : i32
    %c0_i32_1 = arith.constant 0 : i32
    return %c0_i32, %c0_i32_0 : i32, i32
  }
  func.func @transform_3(%arg0: i32) -> (i32, i32) {
    %c0_i32 = arith.constant 0 : i32
    %c0_i32_0 = arith.constant 0 : i32
    return %arg0, %c0_i32 : i32, i32
  }
}

</mosaic_0001>

<llo_original>
// kernel: tpu_custom_call.1
$region0: #{tpu_custom_call.1}
  #allocation0 [shape = 'u32[]', space=smem, size = 0x4, offset = 0x4, fixed_abs, tag = 'smem constant byte address 0x4 - core index']
  #allocation1 [shape = 'u32[144,128]{1,0:T(1,128)}', space=vmem, size = 0x12000, scoped, tag = 'internal scratch']
  %s0 = inlined_call_operand.vmem [shape: bf16[128,64], index: 0, kind: input, shape index: {}]
  %s1 = inlined_call_operand.vmem [shape: bf16[64,256], index: 1, kind: input, shape index: {}]
  %s2 = inlined_call_operand.vmem [shape: f32[1,256], index: 2, kind: input, shape index: {}]
  %s3 = inlined_call_operand.hbm [shape: bf16[128,256], index: 3, kind: output, shape index: {}]
  %s4 = sld [smem:[#allocation0]]
  $region22: #{tpu_custom_call.1} parent=0
    _
  %s6 = ssub.s32 1, %s4
  %s7 = scalar_select 0, %s6, %s4
  $region1: #{tpu_custom_call.1} parent=0
    #allocation2 [shape = 'u8[65536]{0}', space=vmem, size = 0x10000, scoped, tag = 'output window, operand 0, single buffered']
    #allocation3 [shape = 's32[1]{0}', space=sflag, size = 0x4, scoped, tag = 'scoped memory for tpu_custom_call.1']
    %8 = vsyncpa [#allocation3], 0
    // Predicated region
    $region2: #{tpu_custom_call.1} parent=1 // pred_check
      _
    $region3: #{tpu_custom_call.1} parent=1 // pred_check_branch
      %10 = sbr.rel (0) target = $region5
    $region4: #{tpu_custom_call.1} parent=1 // pred_region
      _
    $region5: #{tpu_custom_call.1} parent=1 // pred_fallthru
      _
    // Predicated region
    $region6: #{tpu_custom_call.1} parent=1 // pred_check
      _
    $region7: #{tpu_custom_call.1} parent=1 // pred_check_branch
      %12 = sbr.rel (0) target = $region9
    $region8: #{tpu_custom_call.1} parent=1 // pred_region
      _
    $region9: #{tpu_custom_call.1} parent=1 // pred_fallthru
      _
    // Predicated region
    $region10: #{tpu_custom_call.1} parent=1 // pred_check
      _
    $region11: #{tpu_custom_call.1} parent=1 // pred_check_branch
      %14 = sbr.rel (0) target = $region13
    $region12: #{tpu_custom_call.1} parent=1 // pred_region
      _
    $region13: #{tpu_custom_call.1} parent=1 // pred_fallthru
      _
    %v16 = vld [vmem:[%s0] sm:$0xf]
    %v17 = vld [vmem:[%s0 + $0x4] sm:$0xf]
    %v18 = vld [vmem:[%s0 + $0x8] sm:$0xf]
    %v19 = vld [vmem:[%s0 + $0xc] sm:$0xf]
    %v20 = vld [vmem:[%s0 + $0x10] sm:$0xf]
    %v21 = vld [vmem:[%s0 + $0x14] sm:$0xf]
    %v22 = vld [vmem:[%s0 + $0x18] sm:$0xf]
    %v23 = vld [vmem:[%s0 + $0x1c] sm:$0xf]
    %v24 = vld [vmem:[%s0 + $0x20] sm:$0xf]
    %v25 = vld [vmem:[%s0 + $0x24] sm:$0xf]
    %v26 = vld [vmem:[%s0 + $0x28] sm:$0xf]
    %v27 = vld [vmem:[%s0 + $0x2c] sm:$0xf]
    %v28 = vld [vmem:[%s0 + $0x30] sm:$0xf]
    %v29 = vld [vmem:[%s0 + $0x34] sm:$0xf]
    %v30 = vld [vmem:[%s0 + $0x38] sm:$0xf]
    %v31 = vld [vmem:[%s0 + $0x3c] sm:$0xf]
    %v32 = vld [vmem:[%s1] sm:$0xff]
    %v33 = vld [vmem:[%s1 + $0x8] sm:$0xff]
    %v34 = vld [vmem:[%s1 + $0x10] sm:$0xff]
    %v35 = vld [vmem:[%s1 + $0x18] sm:$0xff]
    %v36 = vld [vmem:[%s1 + $0x20] sm:$0xff]
    %v37 = vld [vmem:[%s1 + $0x28] sm:$0xff]
    %v38 = vld [vmem:[%s1 + $0x30] sm:$0xff]
    %v39 = vld [vmem:[%s1 + $0x38] sm:$0xff]
    %v40 = vld [vmem:[%s2] sm:$0x3]
    %v42 = vlaneseq
    %v43 = vshrl.u32 %v42, 7
    %v44 = vsub.s32 0, %v43
    %v45 = vrot.slane %v40, %v44
    %v46 = vlaneseq
    %v47 = vshrl.u32 %v46, 7
    %v48 = vsub.s32 1, %v47
    %v49 = vrot.slane %v40, %v48
    %v68 = vunpack.c.l.b16 %v16
    %v69 = vunpack.c.l.b16 %v17
    %v70 = vunpack.c.l.b16 %v18
    %v71 = vunpack.c.l.b16 %v19
    %v72 = vunpack.c.l.b16 %v20
    %v73 = vunpack.c.l.b16 %v21
    %v74 = vunpack.c.l.b16 %v22
    %v75 = vunpack.c.l.b16 %v23
    %v76 = vunpack.c.l.b16 %v24
    %v77 = vunpack.c.l.b16 %v25
    %v78 = vunpack.c.l.b16 %v26
    %v79 = vunpack.c.l.b16 %v27
    %v80 = vunpack.c.l.b16 %v28
    %v81 = vunpack.c.l.b16 %v29
    %v82 = vunpack.c.l.b16 %v30
    %v83 = vunpack.c.l.b16 %v31
    %v84 = vpack.c.b16 %v69, %v68
    %v85 = vpack.c.b16 %v71, %v70
    %v86 = vpack.c.b16 %v73, %v72
    %v87 = vpack.c.b16 %v75, %v74
    %v88 = vpack.c.b16 %v77, %v76
    %v89 = vpack.c.b16 %v79, %v78
    %v90 = vpack.c.b16 %v81, %v80
    %v91 = vpack.c.b16 %v83, %v82
    %v100 = vunpack.c.l.b16 %v32
    %v101 = vunpack.c.h.b16 %v32
    %v102 = vunpack.c.l.b16 %v33
    %v103 = vunpack.c.h.b16 %v33
    %v104 = vunpack.c.l.b16 %v34
    %v105 = vunpack.c.h.b16 %v34
    %v106 = vunpack.c.l.b16 %v35
    %v107 = vunpack.c.h.b16 %v35
    %v108 = vunpack.c.l.b16 %v36
    %v109 = vunpack.c.h.b16 %v36
    %v110 = vunpack.c.l.b16 %v37
    %v111 = vunpack.c.h.b16 %v37
    %v112 = vunpack.c.l.b16 %v38
    %v113 = vunpack.c.h.b16 %v38
    %v114 = vunpack.c.l.b16 %v39
    %v115 = vunpack.c.h.b16 %v39
    %v116 = vpack.c.b16 %v102, %v100
    %v117 = vpack.c.b16 %v103, %v101
    %v118 = vpack.c.b16 %v106, %v104
    %v119 = vpack.c.b16 %v107, %v105
    %v120 = vpack.c.b16 %v110, %v108
    %v121 = vpack.c.b16 %v111, %v109
    %v122 = vpack.c.b16 %v114, %v112
    %v123 = vpack.c.b16 %v115, %v113
    %vm132 = vcmask 523264
    %v134 = vsel %vm132, %v84, 0
    %v137 = vsel %vm132, %v85, 0
    %v140 = vsel %vm132, %v86, 0
    %v143 = vsel %vm132, %v87, 0
    %v146 = vsel %vm132, %v88, 0
    %v149 = vsel %vm132, %v89, 0
    %v152 = vsel %vm132, %v90, 0
    %v155 = vsel %vm132, %v91, 0
    %157 = vmatprep.subr.bf16.mxu0 %v117
    %158 = vmatpush1.bf16.msra.mxu0 %v116
    %159 = vmatprep.subr.bf16.mxu0 %v119
    %160 = vmatpush1.bf16.msra.mxu0 %v118
    %161 = vmatprep.subr.bf16.mxu0 %v121
    %162 = vmatpush1.bf16.msra.mxu0 %v120
    %163 = vmatprep.subr.bf16.mxu0 %v123
    %164 = vmatpush1.bf16.msra.mxu0 %v122
    %165 = vmatprep.subr.bf16.mxu0 0
    %166 = vmatpush1.bf16.msra.mxu0 0
    %167 = vmatprep.subr.bf16.mxu0 0
    %168 = vmatpush1.bf16.msra.mxu0 0
    %169 = vmatprep.subr.bf16.mxu0 0
    %170 = vmatpush1.bf16.msra.mxu0 0
    %171 = vmatprep.subr.bf16.mxu0 0
    %172 = vmatpush1.bf16.msra.mxu0 0
    %173 = vmatprep.subr.bf16.mxu0 0
    %174 = vmatpush1.bf16.msra.mxu0 0
    %175 = vmatprep.subr.bf16.mxu0 0
    %176 = vmatpush1.bf16.msra.mxu0 0
    %177 = vmatprep.subr.bf16.mxu0 0
    %178 = vmatpush1.bf16.msra.mxu0 0
    %179 = vmatprep.subr.bf16.mxu0 0
    %180 = vmatpush1.bf16.msra.mxu0 0
    %181 = vmatprep.subr.bf16.mxu0 0
    %182 = vmatpush1.bf16.msra.mxu0 0
    %183 = vmatprep.subr.bf16.mxu0 0
    %184 = vmatpush1.bf16.msra.mxu0 0
    %185 = vmatprep.subr.bf16.mxu0 0
    %186 = vmatpush1.bf16.msra.mxu0 0
    %187 = vmatprep.subr.bf16.mxu0 0
    %188 = vmatpush1.bf16.msra.mxu0 0
    %189 = vmatprep.mubr.bf16.mxu0 0
    %190 = vmatmul.mubr.bf16.gmra.mrb[0].mxu0 %v134
    %v191 = vpop.f32.mrb[0].mxu0
    %v192 = vadd.f32 %v45, %v191
    %v193 = vpop.f32.mrb[0].mxu0
    %v194 = vadd.f32 %v49, %v193
    %v195 = vpop.f32.mrb[0].mxu0
    %v196 = vadd.f32 %v45, %v195
    %v197 = vpop.f32.mrb[0].mxu0
    %v198 = vadd.f32 %v49, %v197
    %199 = vmatprep.mubr.bf16.mxu0 0
    %200 = vmatmul.mubr.bf16.gmra.mrb[0].mxu0 %v137
    %v201 = vpop.f32.mrb[0].mxu0
    %v202 = vadd.f32 %v45, %v201
    %v203 = vpop.f32.mrb[0].mxu0
    %v204 = vadd.f32 %v49, %v203
    %v205 = vpop.f32.mrb[0].mxu0
    %v206 = vadd.f32 %v45, %v205
    %v207 = vpop.f32.mrb[0].mxu0
    %v208 = vadd.f32 %v49, %v207
    %209 = vmatprep.mubr.bf16.mxu0 0
    %210 = vmatmul.mubr.bf16.gmra.mrb[0].mxu0 %v140
    %v211 = vpop.f32.mrb[0].mxu0
    %v212 = vadd.f32 %v45, %v211
    %v213 = vpop.f32.mrb[0].mxu0
    %v214 = vadd.f32 %v49, %v213
    %v215 = vpop.f32.mrb[0].mxu0
    %v216 = vadd.f32 %v45, %v215
    %v217 = vpop.f32.mrb[0].mxu0
    %v218 = vadd.f32 %v49, %v217
    %219 = vmatprep.mubr.bf16.mxu0 0
    %220 = vmatmul.mubr.bf16.gmra.mrb[0].mxu0 %v143
    %v221 = vpop.f32.mrb[0].mxu0
    %v222 = vadd.f32 %v45, %v221
    %v223 = vpop.f32.mrb[0].mxu0
    %v224 = vadd.f32 %v49, %v223
    %v225 = vpop.f32.mrb[0].mxu0
    %v226 = vadd.f32 %v45, %v225
    %v227 = vpop.f32.mrb[0].mxu0
    %v228 = vadd.f32 %v49, %v227
    %229 = vmatprep.mubr.bf16.mxu0 0
    %230 = vmatmul.mubr.bf16.gmra.mrb[0].mxu0 %v146
    %v231 = vpop.f32.mrb[0].mxu0
    %v232 = vadd.f32 %v45, %v231
    %v233 = vpop.f32.mrb[0].mxu0
    %v234 = vadd.f32 %v49, %v233
    %v235 = vpop.f32.mrb[0].mxu0
    %v236 = vadd.f32 %v45, %v235
    %v237 = vpop.f32.mrb[0].mxu0
    %v238 = vadd.f32 %v49, %v237
    %239 = vmatprep.mubr.bf16.mxu0 0
    %240 = vmatmul.mubr.bf16.gmra.mrb[0].mxu0 %v149
    %v241 = vpop.f32.mrb[0].mxu0
    %v242 = vadd.f32 %v45, %v241
    %v243 = vpop.f32.mrb[0].mxu0
    %v244 = vadd.f32 %v49, %v243
    %v245 = vpop.f32.mrb[0].mxu0
    %v246 = vadd.f32 %v45, %v245
    %v247 = vpop.f32.mrb[0].mxu0
    %v248 = vadd.f32 %v49, %v247
    %249 = vmatprep.mubr.bf16.mxu0 0
    %250 = vmatmul.mubr.bf16.gmra.mrb[0].mxu0 %v152
    %v251 = vpop.f32.mrb[0].mxu0
    %v252 = vadd.f32 %v45, %v251
    %v253 = vpop.f32.mrb[0].mxu0
    %v254 = vadd.f32 %v49, %v253
    %v255 = vpop.f32.mrb[0].mxu0
    %v256 = vadd.f32 %v45, %v255
    %v257 = vpop.f32.mrb[0].mxu0
    %v258 = vadd.f32 %v49, %v257
    %259 = vmatprep.mubr.bf16.mxu0 0
    %260 = vmatmul.mubr.bf16.gmra.mrb[0].mxu0 %v155
    %v261 = vpop.f32.mrb[0].mxu0
    %v262 = vadd.f32 %v45, %v261
    %v263 = vpop.f32.mrb[0].mxu0
    %v264 = vadd.f32 %v49, %v263
    %v265 = vpop.f32.mrb[0].mxu0
    %v266 = vadd.f32 %v45, %v265
    %v267 = vpop.f32.mrb[0].mxu0
    %v268 = vadd.f32 %v49, %v267
    %269 = vdwg.mxu0
    %v270 = vmax.f32 %v192, 0.0
    %v271 = vmax.f32 %v194, 0.0
    %v272 = vmax.f32 %v196, 0.0
    %v273 = vmax.f32 %v198, 0.0
    %v274 = vmax.f32 %v202, 0.0
    %v275 = vmax.f32 %v204, 0.0
    %v276 = vmax.f32 %v206, 0.0
    %v277 = vmax.f32 %v208, 0.0
    %v278 = vmax.f32 %v212, 0.0
    %v279 = vmax.f32 %v214, 0.0
    %v280 = vmax.f32 %v216, 0.0
    %v281 = vmax.f32 %v218, 0.0
    %v282 = vmax.f32 %v222, 0.0
    %v283 = vmax.f32 %v224, 0.0
    %v284 = vmax.f32 %v226, 0.0
    %v285 = vmax.f32 %v228, 0.0
    %v286 = vmax.f32 %v232, 0.0
    %v287 = vmax.f32 %v234, 0.0
    %v288 = vmax.f32 %v236, 0.0
    %v289 = vmax.f32 %v238, 0.0
    %v290 = vmax.f32 %v242, 0.0
    %v291 = vmax.f32 %v244, 0.0
    %v292 = vmax.f32 %v246, 0.0
    %v293 = vmax.f32 %v248, 0.0
    %v294 = vmax.f32 %v252, 0.0
    %v295 = vmax.f32 %v254, 0.0
    %v296 = vmax.f32 %v256, 0.0
    %v297 = vmax.f32 %v258, 0.0
    %v298 = vmax.f32 %v262, 0.0
    %v299 = vmax.f32 %v264, 0.0
    %v300 = vmax.f32 %v266, 0.0
    %v301 = vmax.f32 %v268, 0.0
    %v302 = vpack.c.bf16 %v272, %v270
    %v303 = vpack.c.bf16 %v273, %v271
    %v304 = vpack.c.bf16 %v276, %v274
    %v305 = vpack.c.bf16 %v277, %v275
    %v306 = vpack.c.bf16 %v280, %v278
    %v307 = vpack.c.bf16 %v281, %v279
    %v308 = vpack.c.bf16 %v284, %v282
    %v309 = vpack.c.bf16 %v285, %v283
    %v310 = vpack.c.bf16 %v288, %v286
    %v311 = vpack.c.bf16 %v289, %v287
    %v312 = vpack.c.bf16 %v292, %v290
    %v313 = vpack.c.bf16 %v293, %v291
    %v314 = vpack.c.bf16 %v296, %v294
    %v315 = vpack.c.bf16 %v297, %v295
    %v316 = vpack.c.bf16 %v300, %v298
    %v317 = vpack.c.bf16 %v301, %v299
    %v334 = vunpack.c.l.b16 %v302
    %v335 = vunpack.c.l.b16 %v303
    %v336 = vunpack.c.h.b16 %v302
    %v337 = vunpack.c.h.b16 %v303
    %v338 = vunpack.c.l.b16 %v304
    %v339 = vunpack.c.l.b16 %v305
    %v340 = vunpack.c.h.b16 %v304
    %v341 = vunpack.c.h.b16 %v305
    %v342 = vunpack.c.l.b16 %v306
    %v343 = vunpack.c.l.b16 %v307
    %v344 = vunpack.c.h.b16 %v306
    %v345 = vunpack.c.h.b16 %v307
    %v346 = vunpack.c.l.b16 %v308
    %v347 = vunpack.c.l.b16 %v309
    %v348 = vunpack.c.h.b16 %v308
    %v349 = vunpack.c.h.b16 %v309
    %v350 = vunpack.c.l.b16 %v310
    %v351 = vunpack.c.l.b16 %v311
    %v352 = vunpack.c.h.b16 %v310
    %v353 = vunpack.c.h.b16 %v311
    %v354 = vunpack.c.l.b16 %v312
    %v355 = vunpack.c.l.b16 %v313
    %v356 = vunpack.c.h.b16 %v312
    %v357 = vunpack.c.h.b16 %v313
    %v358 = vunpack.c.l.b16 %v314
    %v359 = vunpack.c.l.b16 %v315
    %v360 = vunpack.c.h.b16 %v314
    %v361 = vunpack.c.h.b16 %v315
    %v362 = vunpack.c.l.b16 %v316
    %v363 = vunpack.c.l.b16 %v317
    %v364 = vunpack.c.h.b16 %v316
    %v365 = vunpack.c.h.b16 %v317
    %v366 = vpack.c.b16 %v335, %v334
    %v367 = vpack.c.b16 %v337, %v336
    %v368 = vpack.c.b16 %v339, %v338
    %v369 = vpack.c.b16 %v341, %v340
    %v370 = vpack.c.b16 %v343, %v342
    %v371 = vpack.c.b16 %v345, %v344
    %v372 = vpack.c.b16 %v347, %v346
    %v373 = vpack.c.b16 %v349, %v348
    %v374 = vpack.c.b16 %v351, %v350
    %v375 = vpack.c.b16 %v353, %v352
    %v376 = vpack.c.b16 %v355, %v354
    %v377 = vpack.c.b16 %v357, %v356
    %v378 = vpack.c.b16 %v359, %v358
    %v379 = vpack.c.b16 %v361, %v360
    %v380 = vpack.c.b16 %v363, %v362
    %v381 = vpack.c.b16 %v365, %v364
    %398 = vst [vmem:[#allocation2] sm:$0xff] %v366
    %399 = vst [vmem:[#allocation2 + $0x8] sm:$0xff] %v367
    %400 = vst [vmem:[#allocation2 + $0x10] sm:$0xff] %v368
    %401 = vst [vmem:[#allocation2 + $0x18] sm:$0xff] %v369
    %402 = vst [vmem:[#allocation2 + $0x20] sm:$0xff] %v370
    %403 = vst [vmem:[#allocation2 + $0x28] sm:$0xff] %v371
    %404 = vst [vmem:[#allocation2 + $0x30] sm:$0xff] %v372
    %405 = vst [vmem:[#allocation2 + $0x38] sm:$0xff] %v373
    %406 = vst [vmem:[#allocation2 + $0x40] sm:$0xff] %v374
    %407 = vst [vmem:[#allocation2 + $0x48] sm:$0xff] %v375
    %408 = vst [vmem:[#allocation2 + $0x50] sm:$0xff] %v376
    %409 = vst [vmem:[#allocation2 + $0x58] sm:$0xff] %v377
    %410 = vst [vmem:[#allocation2 + $0x60] sm:$0xff] %v378
    %411 = vst [vmem:[#allocation2 + $0x68] sm:$0xff] %v379
    %412 = vst [vmem:[#allocation2 + $0x70] sm:$0xff] %v380
    %413 = vst [vmem:[#allocation2 + $0x78] sm:$0xff] %v381
    // Predicated region
    $region14: #{tpu_custom_call.1} parent=1 // pred_check
      _
    $region15: #{tpu_custom_call.1} parent=1 // pred_check_branch
      %415 = sbr.rel (0) target = $region17
    $region16: #{tpu_custom_call.1} parent=1 // pred_region
      %s417 = ssub.s32 2048, 2048
      %418 = vsyncadd [#allocation3], %s417
      %s419 = sshll.u32 [#allocation2], 4
      %s420 = int_to_ptr.vmem [resolvable:$true] %s419
      %425 = dma.vmem_to_hbm [thread:$0]  %s420, 2048, %s3, [#allocation3], 128, 128, 8
    $region17: #{tpu_custom_call.1} parent=1 // pred_fallthru
      _
    // Predicated region
    $region18: #{tpu_custom_call.1} parent=1 // pred_check
      _
    $region19: #{tpu_custom_call.1} parent=1 // pred_check_branch
      %427 = sbr.rel (0) target = $region21
    $region20: #{tpu_custom_call.1} parent=1 // pred_region
      %428 = dma.done [#allocation3], 2048
    $region21: #{tpu_custom_call.1} parent=1 // pred_fallthru
      _
    %429 = vsyncpa [#allocation3], 1

</llo_original>
